<compile_context>
chip_gen: v6e
topology: v6e:2x2x1
jax: 0.10.0
libtpu: 0.0.40
codegen_flags: <defaults>
</compile_context>

<pallas_src>
import functools
import math

import jax
import jax.numpy as jnp
from jax.experimental import pallas as pl
from jax.experimental.pallas import tpu as pltpu

LN_EPS = 1e-5
MASK_NEG = -1e9  # f32-safe additive mask (score math stays f32)


def _layer_norm(x, w, b):
    # x: (R, D); w, b: (1, D)
    mu = jnp.mean(x, axis=-1, keepdims=True)
    xc = x - mu
    var = jnp.mean(xc * xc, axis=-1, keepdims=True)
    return xc * jax.lax.rsqrt(var + LN_EPS) * w + b


def _gelu_tanh(x):
    # TODO(synk): PyTorch nn.GELU defaults to the exact erf form; the tanh
    # approximation is used for guaranteed Mosaic lowering (|diff| ~ 1e-3).
    c = jnp.sqrt(2.0 / jnp.pi).astype(x.dtype)
    return 0.5 * x * (1.0 + jnp.tanh(c * (x + 0.044715 * x * x * x)))


# ---------------------------------------------------------------------------
# Kernel 1: LN1 + fused K|V projection.  Runs once per (batch, seq tile), so
# the N x D x H*(dqk+dv) matmul is no longer redone for every query tile.
# ---------------------------------------------------------------------------
def kv_proj_kernel(g_ref, ln1_w_ref, ln1_b_ref, wkv_ref, bkv_ref, kv_ref):
    h = _layer_norm(g_ref[0], ln1_w_ref[...], ln1_b_ref[...])          # f32
    kv = jnp.dot(h.astype(jnp.bfloat16), wkv_ref[...],
                 preferred_element_type=jnp.float32) + bkv_ref[...]
    kv_ref[0] = kv.astype(kv_ref.dtype)                                # bf16 out


# ---------------------------------------------------------------------------
# Kernel 2: masked+biased attention over one query tile, residual, FFN.
# ---------------------------------------------------------------------------
def enc_layer_kernel(n_heads, d_qk, d_v,
                     g_ref, mask_ref, bias_ref, kv_ref,
                     ln1_w_ref, ln1_b_ref,
                     wq_ref, bq_ref, wo_ref, bo_ref,
                     ln2_w_ref, ln2_b_ref,
                     w1_ref, b1_ref, w2_ref, b2_ref,
                     out_ref):
    bf16 = jnp.bfloat16

    # LN1 only for this tile's query rows (K/V already projected upstream).
    g_q = g_ref[0]                                                     # (TQ, D) f32
    h_q = _layer_norm(g_q, ln1_w_ref[...], ln1_b_ref[...])
    # 1/sqrt(d_qk) is folded into wq/bq in the wrapper.
    q = jnp.dot(h_q.astype(bf16), wq_ref[...],
                preferred_element_type=jnp.float32) + bq_ref[...]      # (TQ, H*dqk)

    kv = kv_ref[0]                                                     # (N, H*(dqk+dv)) bf16
    koff = n_heads * d_qk

    # Additive key mask, computed once (no per-head select on the N^2 path).
    mask_add = jnp.where(mask_ref[0] > 0.0,
                         jnp.float32(0.0), jnp.float32(MASK_NEG))      # (1, N)

    # One (TQ, N) score tile live at a time: good for vreg/VMEM pressure.
    # Softmax math in f32; both attention matmuls on the bf16 MXU path.
    head_outs = []
    for hd in range(n_heads):
        qh = q[:, hd * d_qk:(hd + 1) * d_qk].astype(bf16)              # (TQ, dqk)
        kh = kv[:, hd * d_qk:(hd + 1) * d_qk]                          # (N, dqk)
        vh = kv[:, koff + hd * d_v: koff + (hd + 1) * d_v]             # (N, dv)

        scores = jnp.einsum('qd,kd->qk', qh, kh,
                            preferred_element_type=jnp.float32)        # (TQ, N) f32
        scores = scores + bias_ref[0, hd].astype(jnp.float32) + mask_add
        scores = scores - jnp.max(scores, axis=-1, keepdims=True)
        p = jnp.exp(scores)
        p = p * pl.reciprocal(jnp.sum(p, axis=-1, keepdims=True), approx=True)
        head_outs.append(jnp.dot(p.astype(bf16), vh,
                                 preferred_element_type=jnp.float32))  # (TQ, dv)

    # Fused output projection: ONE matmul with contraction depth H*dv.
    heads = jnp.concatenate(head_outs, axis=-1).astype(bf16)           # (TQ, H*dv)
    attn_out = jnp.dot(heads, wo_ref[...],
                       preferred_element_type=jnp.float32) + bo_ref[...]

    # --- residual 1 ---
    g1 = g_q + attn_out

    # --- FFN: LN -> Linear -> GELU -> (Dropout no-op) -> Linear ---
    h2 = _layer_norm(g1, ln2_w_ref[...], ln2_b_ref[...])
    f = jnp.dot(h2.astype(bf16), w1_ref[...],
                preferred_element_type=jnp.float32) + b1_ref[...]
    f = _gelu_tanh(f)
    f = jnp.dot(f.astype(bf16), w2_ref[...],
                preferred_element_type=jnp.float32) + b2_ref[...]

    # --- residual 2 ---
    # TODO(synk): if production D is not a multiple of 128, pad the feature dim
    # so the output store is lane-dense (avoids masked vst.msk partial stores).
    out_ref[0] = (g1 + f).astype(out_ref.dtype)


def _vmem_budget_bytes():
    cap = 128 << 20
    try:
        info = pltpu.get_tpu_info()
        cap = int(getattr(info, "vmem_capacity_bytes", cap))
    except Exception:
        pass
    # ~20% headroom for Mosaic internal scratch, semaphores, 2nd pipeline buf.
    return int(cap * 0.8)


def enc_layer(G, G_mask, G_bias, params, *, n_heads, d_qk, d_v, block_q=256):
    B, N, D = G.shape
    H = n_heads
    d_ff = params['w1'].shape[1]
    HKV = H * (d_qk + d_v)
    bf16 = jnp.bfloat16

    TQ = min(block_q, N)
    assert N % TQ == 0, "sequence length must be divisible by the query tile"

    # --- one-time weight prep: fold 1/sqrt(d_qk) into Q proj, fuse K|V,
    #     cast all MXU weight operands (and the bias tensor) to bf16 ---
    scale = 1.0 / math.sqrt(d_qk)
    wq_s = (params['wq'] * scale).astype(bf16)
    bq_s = params['bq'] * scale
    wkv = jnp.concatenate([params['wk'], params['wv']], axis=1).astype(bf16)
    bkv = jnp.concatenate([params['bk'], params['bv']], axis=1)
    wo = params['wo'].astype(bf16)
    w1 = params['w1'].astype(bf16)
    w2 = params['w2'].astype(bf16)
    bias_bf16 = G_bias.astype(bf16)   # halves dominant HBM stream & VMEM block

    kv_weights = [params['ln1_w'], params['ln1_b'], wkv, bkv]
    weights = [params['ln1_w'], params['ln1_b'],
               wq_s, bq_s, wo, params['bo'],
               params['ln2_w'], params['ln2_b'],
               w1, params['b1'], w2, params['b2']]

    def _nbytes(a):
        return math.prod(a.shape) * jnp.dtype(a.dtype).itemsize

    weight_bytes = sum(_nbytes(w) for w in weights + kv_weights)
    budget = _vmem_budget_bytes()

    def est_vmem(tq):
        per_tile = (H * tq * N * 2        # bias block (bf16)
                    + 2 * tq * D * 4      # G tile + output tile (f32)
                    + N * HKV * 2         # precomputed kv
                    + N * 4)              # key mask
        scratch = 3 * tq * N * 4          # live f32 score/exp intermediates
        return 2 * per_tile + 2 * weight_bytes + scratch + (4 << 20)

    # Re-derive TQ for the actual VMEM budget (v7x: 64 MiB, v5e/v6e: 128 MiB).
    while TQ > 8 and N % (TQ // 2) == 0 and est_vmem(TQ) > budget:
        TQ //= 2
    vmem_limit = int(min(max(est_vmem(TQ), 16 << 20), budget))

    # ---- kernel 1: LN1 + K|V projection (once per sequence row) ----
    def kv_full_spec(a):
        return pl.BlockSpec(a.shape, lambda b, ni, nd=a.ndim: (0,) * nd)

    kv = pl.pallas_call(
        kv_proj_kernel,
        out_shape=jax.ShapeDtypeStruct((B, N, HKV), bf16),
        grid=(B, N // TQ),
        in_specs=[pl.BlockSpec((1, TQ, D), lambda b, ni: (b, ni, 0))]
                 + [kv_full_spec(a) for a in kv_weights],
        out_specs=pl.BlockSpec((1, TQ, HKV), lambda b, ni: (b, ni, 0)),
        compiler_params=pltpu.CompilerParams(
            dimension_semantics=("parallel", "parallel")),
    )(G, *kv_weights)

    # ---- kernel 2: attention + residual + FFN, tiled over query rows ----
    def full_spec(a):
        return pl.BlockSpec(a.shape, lambda b, qi, nd=a.ndim: (0,) * nd)

    in_specs = [
        pl.BlockSpec((1, TQ, D), lambda b, qi: (b, qi, 0)),           # G query tile
        pl.BlockSpec((1, 1, N), lambda b, qi: (b, 0, 0)),             # key mask
        pl.BlockSpec((1, H, TQ, N), lambda b, qi: (b, 0, qi, 0)),     # bias tile (bf16)
        pl.BlockSpec((1, N, HKV), lambda b, qi: (b, 0, 0)),           # kv (resident per batch)
    ] + [full_spec(a) for a in weights]

    out_spec = pl.BlockSpec((1, TQ, D), lambda b, qi: (b, qi, 0))

    flops = 2 * B * (N * D * H * d_qk               # Q projection
                     + H * N * N * (d_qk + d_v)     # QK^T + PV
                     + N * H * d_v * D              # output projection
                     + 2 * N * D * d_ff)            # FFN
    transcendentals = B * (H * N * N + N * d_ff)    # exp + tanh(GELU)
    bytes_accessed = int(B * H * N * N * 2          # bias (bf16, dominant)
                         + 2 * B * N * D * 4        # G in + out
                         + B * N * HKV * 2          # kv
                         + B * N * 4                # mask
                         + weight_bytes)

    kernel = functools.partial(enc_layer_kernel, n_heads, d_qk, d_v)
    return pl.pallas_call(
        kernel,
        out_shape=jax.ShapeDtypeStruct((B, N, D), G.dtype),
        grid=(B, N // TQ),
        in_specs=in_specs,
        out_specs=out_spec,
        compiler_params=pltpu.CompilerParams(
            dimension_semantics=("parallel", "parallel"),
            vmem_limit_bytes=vmem_limit),
        cost_estimate=pl.CostEstimate(flops=flops,
                                      transcendentals=transcendentals,
                                      bytes_accessed=bytes_accessed),
    )(G, G_mask, bias_bf16, kv, *weights)


def enc_layer_ref(G, G_mask, G_bias, params, *, n_heads, d_qk, d_v):
    """Pure-JAX f32 reference (same math) for a sanity check."""
    def ln(x, w, b):
        mu = x.mean(-1, keepdims=True)
        var = ((x - mu) ** 2).mean(-1, keepdims=True)
        return (x - mu) / jnp.sqrt(var + LN_EPS) * w + b

    B, N, D = G.shape
    h = ln(G, params['ln1_w'], params['ln1_b'])
    q = h @ params['wq'] + params['bq']
    k = h @ params['wk'] + params['bk']
    v = h @ params['wv'] + params['bv']
    q = q.reshape(B, N, n_heads, d_qk).transpose(0, 2, 1, 3)
    k = k.reshape(B, N, n_heads, d_qk).transpose(0, 2, 1, 3)
    v = v.reshape(B, N, n_heads, d_v).transpose(0, 2, 1, 3)
    scores = jnp.einsum('bhqd,bhkd->bhqk', q, k) / jnp.sqrt(jnp.float32(d_qk))
    scores = scores + G_bias
    scores = jnp.where(G_mask[:, :, None, :] > 0.0, scores, MASK_NEG)
    p = jax.nn.softmax(scores, axis=-1)
    o = jnp.einsum('bhqk,bhkd->bhqd', p, v).transpose(0, 2, 1, 3).reshape(B, N, -1)
    attn_out = o @ params['wo'] + params['bo']
    G1 = G + attn_out
    h2 = ln(G1, params['ln2_w'], params['ln2_b'])
    c = jnp.sqrt(2.0 / jnp.pi)
    f = h2 @ params['w1'] + params['b1']
    f = 0.5 * f * (1.0 + jnp.tanh(c * (f + 0.044715 * f ** 3)))
    f = f @ params['w2'] + params['b2']
    return G1 + f


if __name__ == "__main__":
    B, N, D = 2, 8, 32           # batch, nodes, dim_in
    H, D_QK, D_V, D_FF = 4, 8, 8, 64

    key = jax.random.PRNGKey(0)
    ks = jax.random.split(key, 16)

    def rnd(k, shape, scale=0.05):
        return (scale * jax.random.normal(k, shape)).astype(jnp.float32)

    params = {
        'ln1_w': jnp.ones((1, D), jnp.float32),
        'ln1_b': jnp.zeros((1, D), jnp.float32),
        'wq': rnd(ks[0], (D, H * D_QK)), 'bq': rnd(ks[1], (1, H * D_QK)),
        'wk': rnd(ks[2], (D, H * D_QK)), 'bk': rnd(ks[3], (1, H * D_QK)),
        'wv': rnd(ks[4], (D, H * D_V)),  'bv': rnd(ks[5], (1, H * D_V)),
        'wo': rnd(ks[6], (H * D_V, D)),  'bo': rnd(ks[7], (1, D)),
        'ln2_w': jnp.ones((1, D), jnp.float32),
        'ln2_b': jnp.zeros((1, D), jnp.float32),
        'w1': rnd(ks[8], (D, D_FF)),  'b1': rnd(ks[9], (1, D_FF)),
        'w2': rnd(ks[10], (D_FF, D)), 'b2': rnd(ks[11], (1, D)),
    }

    G = rnd(ks[12], (B, N, D), scale=1.0)
    G_bias = rnd(ks[13], (B, H, N, N), scale=0.1)
    G_mask = jnp.ones((B, 1, N), jnp.float32).at[1, 0, N - 1].set(0.0)

    out = enc_layer(G, G_mask, G_bias, params, n_heads=H, d_qk=D_QK, d_v=D_V)
    out = jax.block_until_ready(out)

    ref = enc_layer_ref(G, G_mask, G_bias, params, n_heads=H, d_qk=D_QK, d_v=D_V)
    assert out.shape == (B, N, D)
    # Tolerance covers bf16 MXU operands, tanh-GELU vs erf-GELU and the EUP
    # approx reciprocal (residual path / softmax stats stay f32).
    err = float(jnp.max(jnp.abs(out - ref)))
    assert err < 2e-2, f"mismatch vs pure-JAX reference: {err}"

    print("KERNEL_OK")
</pallas_src>

<mosaic_0001>
module attributes {stable_mosaic.version = 11 : i64} {
  func.func @kv_proj_kernel(%arg0: i32, %arg1: i32, %arg2: memref<1x8x32xf32, #tpu.memory_space<vmem>>, %arg3: memref<1x32xf32, #tpu.memory_space<vmem>>, %arg4: memref<1x32xf32, #tpu.memory_space<vmem>>, %arg5: memref<32x64xbf16, #tpu.memory_space<vmem>>, %arg6: memref<1x64xf32, #tpu.memory_space<vmem>>, %arg7: memref<1x8x64xbf16, #tpu.memory_space<vmem>>) attributes {dimension_semantics = [#tpu.dimension_semantics<parallel>, #tpu.dimension_semantics<parallel>], iteration_bounds = array<i64: 2, 1>, scalar_prefetch = 0 : i64, scratch_operands = 0 : i64, tpu.core_type = #tpu.core_type<tc>, window_params = [{transform_indices = @transform_0, window_bounds = array<i64: 1, 8, 32>}, {pipeline_mode = #tpu.pipeline_mode<synchronous>, transform_indices = @transform_1, window_bounds = array<i64: 1, 32>}, {pipeline_mode = #tpu.pipeline_mode<synchronous>, transform_indices = @transform_2, window_bounds = array<i64: 1, 32>}, {pipeline_mode = #tpu.pipeline_mode<synchronous>, transform_indices = @transform_3, window_bounds = array<i64: 32, 64>}, {pipeline_mode = #tpu.pipeline_mode<synchronous>, transform_indices = @transform_4, window_bounds = array<i64: 1, 64>}, {transform_indices = @transform_5, window_bounds = array<i64: 1, 8, 64>}]} {
    %c0 = arith.constant 0 : index
    %c0_0 = arith.constant 0 : index
    %c0_1 = arith.constant 0 : index
    %0 = vector.load %arg2[%c0, %c0_0, %c0_1] : memref<1x8x32xf32, #tpu.memory_space<vmem>>, vector<1x8x32xf32>
    %1 = vector.shape_cast %0 : vector<1x8x32xf32> to vector<8x32xf32>
    %c0_2 = arith.constant 0 : index
    %c0_3 = arith.constant 0 : index
    %2 = vector.load %arg3[%c0_2, %c0_3] : memref<1x32xf32, #tpu.memory_space<vmem>>, vector<1x32xf32>
    %c0_4 = arith.constant 0 : index
    %c0_5 = arith.constant 0 : index
    %3 = vector.load %arg4[%c0_4, %c0_5] : memref<1x32xf32, #tpu.memory_space<vmem>>, vector<1x32xf32>
    %cst = arith.constant dense<0.000000e+00> : vector<8xf32>
    %4 = vector.multi_reduction <add>, %1, %cst [1] : vector<8x32xf32> to vector<8xf32>
    %5 = vector.shape_cast %4 : vector<8xf32> to vector<8x1xf32>
    %cst_6 = arith.constant 3.200000e+01 : f32
    %6 = vector.broadcast %cst_6 : f32 to vector<8x1xf32>
    %7 = arith.divf %5, %6 : vector<8x1xf32>
    %8 = vector.broadcast %7 : vector<8x1xf32> to vector<8x32xf32>
    %9 = arith.subf %1, %8 : vector<8x32xf32>
    %10 = arith.mulf %9, %9 : vector<8x32xf32>
    %cst_7 = arith.constant dense<0.000000e+00> : vector<8xf32>
    %11 = vector.multi_reduction <add>, %10, %cst_7 [1] : vector<8x32xf32> to vector<8xf32>
    %12 = vector.shape_cast %11 : vector<8xf32> to vector<8x1xf32>
    %cst_8 = arith.constant 3.200000e+01 : f32
    %13 = vector.broadcast %cst_8 : f32 to vector<8x1xf32>
    %14 = arith.divf %12, %13 : vector<8x1xf32>
    %cst_9 = arith.constant 9.99999974E-6 : f32
    %15 = vector.broadcast %cst_9 : f32 to vector<8x1xf32>
    %16 = arith.addf %14, %15 : vector<8x1xf32>
    %17 = math.rsqrt %16 : vector<8x1xf32>
    %18 = vector.broadcast %17 : vector<8x1xf32> to vector<8x32xf32>
    %19 = arith.mulf %9, %18 : vector<8x32xf32>
    %20 = vector.broadcast %2 : vector<1x32xf32> to vector<8x32xf32>
    %21 = arith.mulf %19, %20 : vector<8x32xf32>
    %22 = vector.broadcast %3 : vector<1x32xf32> to vector<8x32xf32>
    %23 = arith.addf %21, %22 : vector<8x32xf32>
    %24 = arith.truncf %23 : vector<8x32xf32> to vector<8x32xbf16>
    %c0_10 = arith.constant 0 : index
    %c0_11 = arith.constant 0 : index
    %25 = vector.load %arg5[%c0_10, %c0_11] : memref<32x64xbf16, #tpu.memory_space<vmem>>, vector<32x64xbf16>
    %cst_12 = arith.constant dense<0.000000e+00> : vector<8x64xf32>
    %26 = tpu.matmul %24, %25, %cst_12 {dimension_numbers = #tpu.dot_dimension_numbers<[1], [0], [0], [1], [0, 0, 1, 1], [], []>} : vector<8x32xbf16>, vector<32x64xbf16>, vector<8x64xf32> -> vector<8x64xf32>
    %c0_13 = arith.constant 0 : index
    %c0_14 = arith.constant 0 : index
    %27 = vector.load %arg6[%c0_13, %c0_14] : memref<1x64xf32, #tpu.memory_space<vmem>>, vector<1x64xf32>
    %28 = vector.broadcast %27 : vector<1x64xf32> to vector<8x64xf32>
    %29 = arith.addf %26, %28 : vector<8x64xf32>
    %30 = arith.truncf %29 : vector<8x64xf32> to vector<8x64xbf16>
    %c0_15 = arith.constant 0 : index
    %c0_16 = arith.constant 0 : index
    %c0_17 = arith.constant 0 : index
    %31 = vector.load %arg7[%c0_15, %c0_16, %c0_17] : memref<1x8x64xbf16, #tpu.memory_space<vmem>>, vector<1x8x64xbf16>
    %32 = vector.shape_cast %31 : vector<1x8x64xbf16> to vector<8x64xbf16>
    %33 = vector.shape_cast %30 : vector<8x64xbf16> to vector<1x8x64xbf16>
    tpu.vector_store %arg7[%c0_15, %c0_16, %c0_17], %33 {strides = array<i32>} : memref<1x8x64xbf16, #tpu.memory_space<vmem>>, vector<1x8x64xbf16>,
    return
  }
  func.func @transform_0(%arg0: i32, %arg1: i32) -> (i32, i32, i32) {
    %c0_i32 = arith.constant 0 : i32
    %c0_i32_0 = arith.constant 0 : i32
    return %arg0, %arg1, %c0_i32 : i32, i32, i32
  }
  func.func @transform_1(%arg0: i32, %arg1: i32) -> (i32, i32) {
    %c0_i32 = arith.constant 0 : i32
    %c0_i32_0 = arith.constant 0 : i32
    %c0_i32_1 = arith.constant 0 : i32
    return %c0_i32, %c0_i32_0 : i32, i32
  }
  func.func @transform_2(%arg0: i32, %arg1: i32) -> (i32, i32) {
    %c0_i32 = arith.constant 0 : i32
    %c0_i32_0 = arith.constant 0 : i32
    %c0_i32_1 = arith.constant 0 : i32
    return %c0_i32, %c0_i32_0 : i32, i32
  }
  func.func @transform_3(%arg0: i32, %arg1: i32) -> (i32, i32) {
    %c0_i32 = arith.constant 0 : i32
    %c0_i32_0 = arith.constant 0 : i32
    %c0_i32_1 = arith.constant 0 : i32
    return %c0_i32, %c0_i32_0 : i32, i32
  }
  func.func @transform_4(%arg0: i32, %arg1: i32) -> (i32, i32) {
    %c0_i32 = arith.constant 0 : i32
    %c0_i32_0 = arith.constant 0 : i32
    %c0_i32_1 = arith.constant 0 : i32
    return %c0_i32, %c0_i32_0 : i32, i32
  }
  func.func @transform_5(%arg0: i32, %arg1: i32) -> (i32, i32, i32) {
    %c0_i32 = arith.constant 0 : i32
    %c0_i32_0 = arith.constant 0 : i32
    return %arg0, %arg1, %c0_i32 : i32, i32, i32
  }
}

</mosaic_0001>

<llo_original>
// kernel: tpu_custom_call.1
$region0: #{tpu_custom_call.1}
  #allocation0 [shape = 'u32[]', space=smem, size = 0x4, offset = 0x4, fixed_abs, tag = 'smem constant byte address 0x4 - core index']
  #allocation1 [shape = 'u32[144,128]{1,0:T(1,128)}', space=vmem, size = 0x12000, scoped, tag = 'internal scratch']
  %s0 = inlined_call_operand.hbm [shape: f32[2,8,32], index: 0, kind: input, shape index: {}]
  %s1 = inlined_call_operand.vmem [shape: f32[1,32], index: 1, kind: input, shape index: {}]
  %s2 = inlined_call_operand.vmem [shape: f32[1,32], index: 2, kind: input, shape index: {}]
  %s3 = inlined_call_operand.hbm [shape: bf16[32,64], index: 3, kind: input, shape index: {}]
  %s4 = inlined_call_operand.vmem [shape: f32[1,64], index: 4, kind: input, shape index: {}]
  %s5 = inlined_call_operand.hbm [shape: bf16[2,8,64], index: 5, kind: output, shape index: {}]
  %s6 = sld [smem:[#allocation0]]
  $region61: #{tpu_custom_call.1} parent=0
    _
  %s8 = ssub.s32 1, %s6
  %s9 = scalar_select 0, %s8, %s6
  $region1: #{tpu_custom_call.1} parent=0
    #allocation2 [shape = 'u8[8192]{0}', space=vmem, size = 0x2000, scoped, tag = 'input window, operand 0']
    #allocation3 [shape = 's32[2]{0}', space=sflag, size = 0x8, scoped, tag = 'scoped memory for tpu_custom_call.1']
    #allocation4 [shape = 's32[2]{0}', space=sflag, size = 0x8, scoped, tag = 'scoped memory for tpu_custom_call.1']
    #allocation5 [shape = 'u8[8192]{0}', space=vmem, size = 0x2000, scoped, tag = 'input window, operand 3, single buffered']
    #allocation6 [shape = 's32[1]{0}', space=sflag, size = 0x4, scoped, tag = 'scoped memory for tpu_custom_call.1']
    #allocation7 [shape = 'u8[4096]{0}', space=vmem, size = 0x1000, scoped, tag = 'output window, operand 0']
    %10 = vsyncpa [#allocation3], 0
    %s11 = scalar_lea.sflag [#allocation3], 1
    %12 = vsyncpa %s11, 0
    %13 = vsyncpa [#allocation6], 0
    %14 = vsyncpa [#allocation4], 0
    %s15 = scalar_lea.sflag [#allocation4], 1
    %16 = vsyncpa %s15, 0
    loop: start=0, step=1, limit=4
    $region2: #{tpu_custom_call.1} parent=1 // loop_pre_header
      _
    $region3: #{tpu_custom_call.1} parent=1 // loop_header
      %s18 = sphi 0, %s22
      %p19 = scmp.ge.s32.totalorder %s18, 4
      %s25 = sphi 0, %s37
      %s26 = sphi 0, %s33
      %s27 = sphi 0, %s25
      %s28 = sphi 0, %s26
      %s29 = sphi 0, %s27
      %s30 = sphi 0, %s28
      %s42 = sphi 0, %s44
      %s45 = sphi 0, %s42
      %s46 = sphi 0, %s45
      %s62 = sphi 0, %s46
      %s66 = sphi 0, %s66
      %s68 = sphi 0, %s66
      %s69 = sphi 0, %s68
      %s83 = sphi 0, %s69
      %s87 = sphi 0, %s87
      %s89 = sphi 0, %s87
      %s90 = sphi 0, %s89
      %s104 = sphi 0, %s90
      %s108 = sphi 0, %s108
      %s110 = sphi 0, %s108
      %s111 = sphi 0, %s110
      %s125 = sphi 0, %s111
      %s129 = sphi 0, %s129
      %s131 = sphi 0, %s129
      %s132 = sphi 0, %s131
      %s146 = sphi 0, %s132
      %s154 = sphi 0, %s156
      %s157 = sphi 0, %s154
      %s158 = sphi 0, %s157
      %s174 = sphi 0, %s158
    $region4: #{tpu_custom_call.1} parent=1 // loop_header_branch
      %21 = sbr.rel (%p19) target = $region8
    $region5: #{tpu_custom_call.1} parent=1 // loop_body
      %s23 = ssub.s32 %s18, 1
      %s24 = ssub.s32 %s18, 2
      %s31 = sadd.s32 1, %s26
      %p32 = scmp.ge.s32.totalorder %s31, 1
      %s33 = scalar_select %p32, 0, %s31
      %s34 = sadd.s32 1, %s25
      %s35 = scalar_select %p32, %s34, %s25
      %p36 = scmp.ge.s32.totalorder %s35, 2
      %s37 = scalar_select %p36, 0, %s35
      %s38 = ssub.s32 %s25, %s37
      %s39 = ssub.s32 %s26, %s33
      %s40 = sor.u32 %s38, %s39
      %p41 = scmp.eq.s32.totalorder %s40, 0
      %s43 = sadd.s32 %s42, 1
      %s44 = scalar_select %p41, %s42, %s43
      %p47 = pneg %p41
      %p48 = scmp.eq.s32.totalorder %s18, 1
      %p49 = por %p47, %p48
      %p50 = scmp.ne.s32.totalorder %s42, %s45
      %p51 = scmp.eq.s32.totalorder %s18, 0
      %p52 = por %p50, %p51
      %p53 = scmp.ne.s32.totalorder %s42, %s45
      %p54 = scmp.eq.s32.totalorder %s23, 1
      %p55 = por %p53, %p54
      %p56 = scmp.ne.s32.totalorder %s45, %s46
      %p57 = scmp.eq.s32.totalorder %s23, 0
      %p58 = por %p56, %p57
      %p59 = scmp.ne.s32.totalorder %s45, %s46
      %p60 = scmp.eq.s32.totalorder %s24, 1
      %p61 = por %p59, %p60
      %p63 = scmp.ne.s32.totalorder %s46, %s62
      %p64 = scmp.eq.s32.totalorder %s24, 0
      %p65 = por %p63, %p64
      %s67 = sadd.s32 %s66, 1
      %p70 = scmp.eq.s32.totalorder %s18, 1
      %p71 = scmp.ne.s32.totalorder %s66, %s68
      %p72 = scmp.eq.s32.totalorder %s18, 0
      %p73 = por %p71, %p72
      %p74 = scmp.ne.s32.totalorder %s66, %s68
      %p75 = scmp.eq.s32.totalorder %s23, 1
      %p76 = por %p74, %p75
      %p77 = scmp.ne.s32.totalorder %s68, %s69
      %p78 = scmp.eq.s32.totalorder %s23, 0
      %p79 = por %p77, %p78
      %p80 = scmp.ne.s32.totalorder %s68, %s69
      %p81 = scmp.eq.s32.totalorder %s24, 1
      %p82 = por %p80, %p81
      %p84 = scmp.ne.s32.totalorder %s69, %s83
      %p85 = scmp.eq.s32.totalorder %s24, 0
      %p86 = por %p84, %p85
      %s88 = sadd.s32 %s87, 1
      %p91 = scmp.eq.s32.totalorder %s18, 1
      %p92 = scmp.ne.s32.totalorder %s87, %s89
      %p93 = scmp.eq.s32.totalorder %s18, 0
      %p94 = por %p92, %p93
      %p95 = scmp.ne.s32.totalorder %s87, %s89
      %p96 = scmp.eq.s32.totalorder %s23, 1
      %p97 = por %p95, %p96
      %p98 = scmp.ne.s32.totalorder %s89, %s90
      %p99 = scmp.eq.s32.totalorder %s23, 0
      %p100 = por %p98, %p99
      %p101 = scmp.ne.s32.totalorder %s89, %s90
      %p102 = scmp.eq.s32.totalorder %s24, 1
      %p103 = por %p101, %p102
      %p105 = scmp.ne.s32.totalorder %s90, %s104
      %p106 = scmp.eq.s32.totalorder %s24, 0
      %p107 = por %p105, %p106
      %s109 = sadd.s32 %s108, 1
      %p112 = scmp.eq.s32.totalorder %s18, 1
      %p113 = scmp.ne.s32.totalorder %s108, %s110
      %p114 = scmp.eq.s32.totalorder %s18, 0
      %p115 = por %p113, %p114
      %p116 = scmp.ne.s32.totalorder %s108, %s110
      %p117 = scmp.eq.s32.totalorder %s23, 1
      %p118 = por %p116, %p117
      %p119 = scmp.ne.s32.totalorder %s110, %s111
      %p120 = scmp.eq.s32.totalorder %s23, 0
      %p121 = por %p119, %p120
      %p122 = scmp.ne.s32.totalorder %s110, %s111
      %p123 = scmp.eq.s32.totalorder %s24, 1
      %p124 = por %p122, %p123
      %p126 = scmp.ne.s32.totalorder %s111, %s125
      %p127 = scmp.eq.s32.totalorder %s24, 0
      %p128 = por %p126, %p127
      %s130 = sadd.s32 %s129, 1
      %p133 = scmp.eq.s32.totalorder %s18, 1
      %p134 = scmp.ne.s32.totalorder %s129, %s131
      %p135 = scmp.eq.s32.totalorder %s18, 0
      %p136 = por %p134, %p135
      %p137 = scmp.ne.s32.totalorder %s129, %s131
      %p138 = scmp.eq.s32.totalorder %s23, 1
      %p139 = por %p137, %p138
      %p140 = scmp.ne.s32.totalorder %s131, %s132
      %p141 = scmp.eq.s32.totalorder %s23, 0
      %p142 = por %p140, %p141
      %p143 = scmp.ne.s32.totalorder %s131, %s132
      %p144 = scmp.eq.s32.totalorder %s24, 1
      %p145 = por %p143, %p144
      %p147 = scmp.ne.s32.totalorder %s132, %s146
      %p148 = scmp.eq.s32.totalorder %s24, 0
      %p149 = por %p147, %p148
      %s150 = ssub.s32 %s25, %s37
      %s151 = ssub.s32 %s26, %s33
      %s152 = sor.u32 %s150, %s151
      %p153 = scmp.eq.s32.totalorder %s152, 0
      %s155 = sadd.s32 %s154, 1
      %s156 = scalar_select %p153, %s154, %s155
      %p159 = pneg %p153
      %p160 = scmp.eq.s32.totalorder %s18, 1
      %p161 = por %p159, %p160
      %p162 = scmp.ne.s32.totalorder %s154, %s157
      %p163 = scmp.eq.s32.totalorder %s18, 0
      %p164 = por %p162, %p163
      %p165 = scmp.ne.s32.totalorder %s154, %s157
      %p166 = scmp.eq.s32.totalorder %s23, 1
      %p167 = por %p165, %p166
      %p168 = scmp.ne.s32.totalorder %s157, %s158
      %p169 = scmp.eq.s32.totalorder %s23, 0
      %p170 = por %p168, %p169
      %p171 = scmp.ne.s32.totalorder %s157, %s158
      %p172 = scmp.eq.s32.totalorder %s24, 1
      %p173 = por %p171, %p172
      %p175 = scmp.ne.s32.totalorder %s158, %s174
      %p176 = scmp.eq.s32.totalorder %s24, 0
      %p177 = por %p175, %p176
      %p178 = scmp.le.s32.totalorder 1, %s18
      %p179 = scmp.lt.s32.totalorder %s18, 3
      %p180 = pnand %p178, %p179
      %p181 = pneg %p180
      // Predicated region
      $region9: #{tpu_custom_call.1} parent=5 // pred_check
        _
      $region10: #{tpu_custom_call.1} parent=5 // pred_check_branch
        %183 = sbr.rel (%p180) target = $region12
      $region11: #{tpu_custom_call.1} parent=5 // pred_region
        %s184 = ssub.s32 %s18, 1
        // Predicated region
        $region13: #{tpu_custom_call.1} parent=11 // pred_check
          %p185 = pneg %p79
        $region14: #{tpu_custom_call.1} parent=11 // pred_check_branch
          %187 = sbr.rel (%p185) target = $region16
        $region15: #{tpu_custom_call.1} parent=11 // pred_region
          _
        $region16: #{tpu_custom_call.1} parent=11 // pred_fallthru
          _
        // Predicated region
        $region17: #{tpu_custom_call.1} parent=11 // pred_check
          %p188 = pneg %p100
        $region18: #{tpu_custom_call.1} parent=11 // pred_check_branch
          %190 = sbr.rel (%p188) target = $region20
        $region19: #{tpu_custom_call.1} parent=11 // pred_region
          _
        $region20: #{tpu_custom_call.1} parent=11 // pred_fallthru
          _
        // Predicated region
        $region21: #{tpu_custom_call.1} parent=11 // pred_check
          %p191 = pneg %p121
        $region22: #{tpu_custom_call.1} parent=11 // pred_check_branch
          %193 = sbr.rel (%p191) target = $region24
        $region23: #{tpu_custom_call.1} parent=11 // pred_region
          %s195 = ssub.s32 256, 256
          %196 = vsyncadd [#allocation6], %s195
          %s197 = sshll.u32 [#allocation5], 4
          %s198 = int_to_ptr.vmem [resolvable:$true] %s197
          %203 = dma.hbm_to_vmem [thread:$0]  %s3, 256, %s198, [#allocation6], 64, 64, 4
        $region24: #{tpu_custom_call.1} parent=11 // pred_fallthru
          _
        // Predicated region
        $region25: #{tpu_custom_call.1} parent=11 // pred_check
          %p204 = pneg %p142
        $region26: #{tpu_custom_call.1} parent=11 // pred_check_branch
          %206 = sbr.rel (%p204) target = $region28
        $region27: #{tpu_custom_call.1} parent=11 // pred_region
          _
        $region28: #{tpu_custom_call.1} parent=11 // pred_fallthru
          _
      $region12: #{tpu_custom_call.1} parent=5 // pred_fallthru
        _
      %p207 = scmp.lt.s32.totalorder %s18, 2
      // Predicated region
      $region29: #{tpu_custom_call.1} parent=5 // pred_check
        %p208 = pneg %p207
      $region30: #{tpu_custom_call.1} parent=5 // pred_check_branch
        %210 = sbr.rel (%p208) target = $region32
      $region31: #{tpu_custom_call.1} parent=5 // pred_region
        // Predicated region
        $region33: #{tpu_custom_call.1} parent=31 // pred_check
          %p211 = pneg %p52
        $region34: #{tpu_custom_call.1} parent=31 // pred_check_branch
          %213 = sbr.rel (%p211) target = $region36
        $region35: #{tpu_custom_call.1} parent=31 // pred_region
          %s214 = sand.u32 %s42, 1
          %s215 = scalar_lea.sflag [#allocation3], %s214
          %s216 = sand.u32 %s42, 1
          %s217 = smul.addr %s216, 8
          %s218 = scalar_lea.vmem [#allocation2], %s217
          %s220 = ssub.s32 128, 128
          %221 = vsyncadd %s215, %s220
          %s222 = sadd.s32 %s26, %s25
          %s223 = smul.addr %s222, 128
          %s224 = scalar_lea.hbm %s0, %s223
          %s226 = sshll.u32 %s218, 4
          %s227 = int_to_ptr.vmem [resolvable:$true] %s226
          %229 = dma.hbm_to_vmem [thread:$0]  %s224, 128, %s227, %s215
        $region36: #{tpu_custom_call.1} parent=31 // pred_fallthru
          _
      $region32: #{tpu_custom_call.1} parent=5 // pred_fallthru
        _
      %p230 = scmp.le.s32.totalorder 1, %s18
      %p231 = scmp.lt.s32.totalorder %s18, 3
      %p232 = pnand %p230, %p231
      %p233 = pneg %p232
      // Predicated region
      $region37: #{tpu_custom_call.1} parent=5 // pred_check
        _
      $region38: #{tpu_custom_call.1} parent=5 // pred_check_branch
        %235 = sbr.rel (%p232) target = $region40
      $region39: #{tpu_custom_call.1} parent=5 // pred_region
        %s236 = ssub.s32 %s18, 1
        %s237 = sand.u32 %s45, 1
        %s238 = scalar_lea.sflag [#allocation3], %s237
        %s239 = sand.u32 %s45, 1
        %s240 = smul.addr %s239, 8
        %s241 = scalar_lea.vmem [#allocation2], %s240
        // Predicated region
        $region41: #{tpu_custom_call.1} parent=39 // pred_check
          %p242 = pneg %p58
        $region42: #{tpu_custom_call.1} parent=39 // pred_check_branch
          %244 = sbr.rel (%p242) target = $region44
        $region43: #{tpu_custom_call.1} parent=39 // pred_region
          %245 = dma.done %s238, 128
        $region44: #{tpu_custom_call.1} parent=39 // pred_fallthru
          _
        // Predicated region
        $region45: #{tpu_custom_call.1} parent=39 // pred_check
          %p246 = pneg %p121
        $region46: #{tpu_custom_call.1} parent=39 // pred_check_branch
          %248 = sbr.rel (%p246) target = $region48
        $region47: #{tpu_custom_call.1} parent=39 // pred_region
          %249 = dma.done [#allocation6], 256
        $region48: #{tpu_custom_call.1} parent=39 // pred_fallthru
          _
        %s250 = sand.u32 %s45, 1
        %s251 = scalar_lea.sflag [#allocation3], %s250
        %s252 = sand.u32 %s45, 1
        %s253 = smul.addr %s252, 8
        %s254 = scalar_lea.vmem [#allocation2], %s253
        %p255 = pneg %p58
        %p256 = pneg %p55
        %p257 = pneg %p79
        %p258 = pneg %p76
        %p259 = pneg %p100
        %p260 = pneg %p97
        %p261 = pneg %p121
        %p262 = pneg %p118
        %p263 = pneg %p142
        %p264 = pneg %p139
        %p265 = pneg %p170
        %p266 = pneg %p167
        %s267 = sand.u32 %s157, 1
        %s268 = scalar_lea.sflag [#allocation4], %s267
        %s269 = sand.u32 %s157, 1
        %s270 = smul.addr %s269, 4
        %s271 = scalar_lea.vmem [#allocation7], %s270
        %v273 = vld [vmem:[%s241] sm:$0xff]
        %v274 = vld [vmem:[%s1] sm:$0x1]
        %v275 = vld [vmem:[%s2] sm:$0x1]
        %vm276 = vcmask 261120
        %v277 = vsel %vm276, %v273, 0.0
        %278 = vadd.xlane.f32.xlu0 %v277
        %v279 = vpop.xlane.xlu0 %278
        %v280 = vrcp.pop 32.0
        %v281 = vmul.f32 %v279, %v280
        %v282 = vsub.f32 %v273, %v281
        %v283 = vmul.f32 %v282, %v282
        %v284 = vsel %vm276, %v283, 0.0
        %285 = vadd.xlane.f32.xlu0 %v284
        %v286 = vpop.xlane.xlu0 %285
        %v287 = vmul.f32 %v286, %v280
        %v288 = vadd.f32 %v287, 1e-05
        %v289 = vrsqrt.pop %v288
        %v290 = vmul.f32 %v282, %v289
        %v292 = vlaneseq
        %v293 = vshrl.u32 %v292, 7
        %v294 = vsub.s32 0, %v293
        %v295 = vrot.slane %v274, %v294
        %v297 = vmul.f32 %v290, %v295
        %v299 = vlaneseq
        %v300 = vshrl.u32 %v299, 7
        %v301 = vsub.s32 0, %v300
        %v302 = vrot.slane %v275, %v301
        %v304 = vadd.f32 %v297, %v302
        %v305 = vpack.c.bf16 %v304, %v304
        %v306 = vld [vmem:[#allocation5] sm:$0xf]
        %v307 = vld [vmem:[#allocation5 + $0x4] sm:$0xf]
        %v308 = vld [vmem:[#allocation5 + $0x8] sm:$0xf]
        %v309 = vld [vmem:[#allocation5 + $0xc] sm:$0xf]
        %v310 = vld [vmem:[%s4] sm:$0x1]
        %v312 = vlaneseq
        %v313 = vshrl.u32 %v312, 7
        %v314 = vsub.s32 0, %v313
        %v315 = vrot.slane %v310, %v314
        %v321 = vunpack.c.l.b16 %v306
        %v322 = vunpack.c.l.b16 %v307
        %v323 = vunpack.c.l.b16 %v308
        %v324 = vunpack.c.l.b16 %v309
        %v325 = vpack.c.b16 %v322, %v321
        %v326 = vpack.c.b16 %v324, %v323
        %v330 = vsel %vm276, %v305, 0
        %332 = vmatprep.subr.bf16.mxu0 0
        %333 = vmatpush1.bf16.msra.mxu0 0
        %334 = vmatprep.subr.bf16.mxu0 0
        %335 = vmatpush1.bf16.msra.mxu0 0
        %336 = vmatprep.subr.bf16.mxu0 0
        %337 = vmatpush1.bf16.msra.mxu0 0
        %338 = vmatprep.subr.bf16.mxu0 0
        %339 = vmatpush1.bf16.msra.mxu0 0
        %340 = vmatprep.subr.bf16.mxu0 0
        %341 = vmatpush1.bf16.msra.mxu0 0
        %342 = vmatprep.subr.bf16.mxu0 0
        %343 = vmatpush1.bf16.msra.mxu0 0
        %344 = vmatprep.subr.bf16.mxu0 0
        %345 = vmatpush1.bf16.msra.mxu0 %v326
        %346 = vmatprep.subr.bf16.mxu0 0
        %347 = vmatpush1.bf16.msra.mxu0 %v325
        %348 = vmatprep.subr.bf16.mxu0 0
        %349 = vmatpush2.bf16.msra.mxu0 0
        %350 = vmatprep.subr.bf16.mxu0 0
        %351 = vmatpush2.bf16.msra.mxu0 0
        %352 = vmatprep.subr.bf16.mxu0 0
        %353 = vmatpush2.bf16.msra.mxu0 0
        %354 = vmatprep.subr.bf16.mxu0 0
        %355 = vmatpush2.bf16.msra.mxu0 0
        %356 = vmatprep.subr.bf16.mxu0 0
        %357 = vmatpush2.bf16.msra.mxu0 0
        %358 = vmatprep.subr.bf16.mxu0 0
        %359 = vmatpush2.bf16.msra.mxu0 0
        %360 = vmatprep.subr.bf16.mxu0 0
        %361 = vmatpush2.bf16.msra.mxu0 0
        %362 = vmatprep.subr.bf16.mxu0 0
        %363 = vmatpush2.bf16.msra.mxu0 0
        %364 = vmatprep.mubr.bf16.mxu0 0
        %365 = vmatmul.mubr.bf16.gmra.mxu0 %v330
        %v366 = vpop.f32.mrf.mxu0
        %v367 = vadd.f32 %v315, %v366
        %v368 = vpop.f32.mrf.mxu0
        %v369 = vpop.f32.mrf.mxu0
        %v370 = vpop.f32.mrf.mxu0
        %371 = vdwg.mxu0
        %v372 = vpack.c.bf16 %v367, %v367
        %vm373 = vcmask 519168
        %374 = vst.msk [vmem:[%s271] sm:$0xf] %vm373, %v372
        %s375 = sand.u32 %s157, 1
        %s376 = scalar_lea.sflag [#allocation4], %s375
        %s377 = sand.u32 %s157, 1
        %s378 = smul.addr %s377, 4
        %s379 = scalar_lea.vmem [#allocation7], %s378
        // Predicated region
        $region49: #{tpu_custom_call.1} parent=39 // pred_check
          %p380 = pneg %p167
        $region50: #{tpu_custom_call.1} parent=39 // pred_check_branch
          %382 = sbr.rel (%p380) target = $region52
        $region51: #{tpu_custom_call.1} parent=39 // pred_region
          %s384 = ssub.s32 64, 64
          %385 = vsyncadd %s376, %s384
          %s386 = sadd.s32 %s28, %s27
          %s387 = smul.addr %s386, 64
          %s388 = scalar_lea.hbm %s5, %s387
          %s390 = sshll.u32 %s379, 4
          %s391 = int_to_ptr.vmem [resolvable:$true] %s390
          %393 = dma.vmem_to_hbm [thread:$0]  %s391, 64, %s388, %s376
        $region52: #{tpu_custom_call.1} parent=39 // pred_fallthru
          _
      $region40: #{tpu_custom_call.1} parent=5 // pred_fallthru
        _
      %p394 = scmp.le.s32.totalorder 2, %s18
      // Predicated region
      $region53: #{tpu_custom_call.1} parent=5 // pred_check
        %p395 = pneg %p394
      $region54: #{tpu_custom_call.1} parent=5 // pred_check_branch
        %397 = sbr.rel (%p395) target = $region56
      $region55: #{tpu_custom_call.1} parent=5 // pred_region
        %s398 = ssub.s32 %s18, 2
        // Predicated region
        $region57: #{tpu_custom_call.1} parent=55 // pred_check
          %p399 = pneg %p173
        $region58: #{tpu_custom_call.1} parent=55 // pred_check_branch
          %401 = sbr.rel (%p399) target = $region60
        $region59: #{tpu_custom_call.1} parent=55 // pred_region
          %s402 = sand.u32 %s158, 1
          %s403 = scalar_lea.sflag [#allocation4], %s402
          %s404 = sand.u32 %s158, 1
          %s405 = smul.addr %s404, 4
          %s406 = scalar_lea.vmem [#allocation7], %s405
          %407 = dma.done %s403, 64
        $region60: #{tpu_custom_call.1} parent=55 // pred_fallthru
          _
      $region56: #{tpu_custom_call.1} parent=5 // pred_fallthru
        _
    $region6: #{tpu_custom_call.1} parent=1 // loop_footer
      %s22 = sadd.s32 1, %s18
    $region7: #{tpu_custom_call.1} parent=1 // loop_footer_branch
      %17 = sbr.rel target = $region3
    $region8: #{tpu_custom_call.1} parent=1 // loop_exit
      _
    %408 = vsyncpa [#allocation3], 1
    %s409 = scalar_lea.sflag [#allocation3], 1
    %410 = vsyncpa %s409, 1
    %411 = vsyncpa [#allocation6], 1
    %412 = vsyncpa [#allocation4], 1
    %s413 = scalar_lea.sflag [#allocation4], 1
    %414 = vsyncpa %s413, 1

</llo_original>
